<compile_context>
chip_gen: v7x
topology: tpu7x:2x2x1
jax: 0.10.0
libtpu: 0.0.40
codegen_flags: <defaults>
</compile_context>

<pallas_src>
import math

import jax
import jax.numpy as jnp
from jax.experimental import pallas as pl
from jax.experimental.pallas import tpu as pltpu


HEAD_PAD = 128  # lane-dense width for the fused actor|critic head output


def _round_up(n, m):
    return ((n + m - 1) // m) * m


def _actor_critic_kernel(
    obs_ref,            # (TB, input_dim)
    emb_ref,            # (TB, embedding_dim)
    w1o_ref, w1e_ref,   # (input_dim, H), (embedding_dim, H)
    b1_ref,             # (1, H)  f32
    w2_ref, b2_ref,     # (H, H), (1, H)
    w3_ref, b3_ref,     # (H, H), (1, H)
    wh_ref, bh_ref,     # (H, HEAD_PAD), (1, HEAD_PAD)   fused actor|critic, zero-padded
    out_ref,            # (TB, HEAD_PAD) f32
):
    cdt = w2_ref.dtype  # compute dtype of the weights (f32 or bf16)

    # Layer 1: split-weight dots replace the XLA-side concat([obs, emb]).
    h = (
        jnp.dot(obs_ref[...].astype(cdt), w1o_ref[...],
                preferred_element_type=jnp.float32)
        + jnp.dot(emb_ref[...].astype(cdt), w1e_ref[...],
                  preferred_element_type=jnp.float32)
        + b1_ref[...]
    )
    h = jnp.maximum(h, 0.0)

    # Layer 2
    h = jnp.dot(h.astype(cdt), w2_ref[...],
                preferred_element_type=jnp.float32) + b2_ref[...]
    h = jnp.maximum(h, 0.0)

    # Layer 3
    h = jnp.dot(h.astype(cdt), w3_ref[...],
                preferred_element_type=jnp.float32) + b3_ref[...]
    h = jnp.maximum(h, 0.0)

    # Fused actor+critic head -> single lane-dense store.
    out = jnp.dot(h.astype(cdt), wh_ref[...],
                  preferred_element_type=jnp.float32) + bh_ref[...]
    out_ref[...] = out.astype(out_ref.dtype)


def elevator_actor_critic_forward(obs, action_embed, params, num_actions=3,
                                  *, block_b=512):
    """obs: (B, input_dim), action_embed: (B, embedding_dim) -> (logits, value)."""
    B, input_dim = obs.shape
    emb_dim = action_embed.shape[1]
    H = params["w2"].shape[0]

    # Batch tile: multiple of 8 (f32 sublane), capped at block_b; pad batch up.
    tb = min(block_b, _round_up(B, 8))
    b_pad = _round_up(B, tb)
    if b_pad != B:
        obs = jnp.pad(obs, ((0, b_pad - B), (0, 0)))
        action_embed = jnp.pad(action_embed, ((0, b_pad - B), (0, 0)))
    grid = (b_pad // tb,)

    def row_spec(d):
        # Tiled over the batch grid.
        return pl.BlockSpec((tb, d), lambda i: (i, 0))

    def resident(arr):
        # Same block index every grid step -> stays VMEM-resident, no re-DMA.
        return pl.BlockSpec(arr.shape, lambda i: (0, 0))

    args = (
        obs, action_embed,
        params["w1_obs"], params["w1_emb"], params["b1"],
        params["w2"], params["b2"],
        params["w3"], params["b3"],
        params["wh"], params["bh"],
    )
    in_specs = [
        row_spec(input_dim), row_spec(emb_dim),
        resident(params["w1_obs"]), resident(params["w1_emb"]),
        resident(params["b1"]),
        resident(params["w2"]), resident(params["b2"]),
        resident(params["w3"]), resident(params["b3"]),
        resident(params["wh"]), resident(params["bh"]),
    ]

    weight_keys = ("w1_obs", "w1_emb", "b1", "w2", "b2", "w3", "b3", "wh", "bh")
    weight_bytes = sum(int(params[k].size) * params[k].dtype.itemsize
                       for k in weight_keys)
    flops = 2 * b_pad * (input_dim * H + emb_dim * H + 2 * H * H + H * HEAD_PAD)
    bytes_accessed = (
        b_pad * (input_dim + emb_dim) * obs.dtype.itemsize   # inputs
        + b_pad * HEAD_PAD * 4                               # fused output slab
        + weight_bytes
    )

    out = pl.pallas_call(
        _actor_critic_kernel,
        out_shape=jax.ShapeDtypeStruct((b_pad, HEAD_PAD), jnp.float32),
        grid=grid,
        in_specs=in_specs,
        out_specs=pl.BlockSpec((tb, HEAD_PAD), lambda i: (i, 0)),
        compiler_params=pltpu.CompilerParams(
            dimension_semantics=("parallel",)),
        cost_estimate=pl.CostEstimate(
            flops=flops, transcendentals=0, bytes_accessed=bytes_accessed),
    )(*args)

    # Free layout plumbing: slice the lane-dense slab outside the kernel.
    logits = out[:B, :num_actions]
    value = out[:B, num_actions:num_actions + 1]
    return logits, value


def init_params(key, input_dim, embedding_dim, hidden_dim=128, num_actions=3,
                weight_dtype=jnp.float32):
    """PyTorch-Linear-style init; weights stored as (in, out).

    Returns kernel params (w1 split, fused/padded head) plus the raw head
    weights (wa/ba/wc/bc, f32) for reference checking.
    Set weight_dtype=jnp.bfloat16 on v6e/v7x for halved weight/activation
    traffic (biases stay f32; accumulation is always f32).
    """
    d_in = input_dim + embedding_dim

    def linear(k, fan_in, fan_out):
        kw, kb = jax.random.split(k)
        bound = 1.0 / math.sqrt(fan_in)
        w = jax.random.uniform(kw, (fan_in, fan_out), jnp.float32, -bound, bound)
        b = jax.random.uniform(kb, (1, fan_out), jnp.float32, -bound, bound)
        return w, b

    keys = jax.random.split(key, 5)
    w1, b1 = linear(keys[0], d_in, hidden_dim)
    w2, b2 = linear(keys[1], hidden_dim, hidden_dim)
    w3, b3 = linear(keys[2], hidden_dim, hidden_dim)
    wa, ba = linear(keys[3], hidden_dim, num_actions)
    wc, bc = linear(keys[4], hidden_dim, 1)

    # Fuse actor|critic heads and zero-pad to a lane-dense width of 128.
    wh = jnp.zeros((hidden_dim, HEAD_PAD), jnp.float32)
    wh = wh.at[:, :num_actions].set(wa).at[:, num_actions].set(wc[:, 0])
    bh = jnp.zeros((1, HEAD_PAD), jnp.float32)
    bh = bh.at[:, :num_actions].set(ba).at[:, num_actions].set(bc[:, 0])

    wd = weight_dtype
    return dict(
        w1_obs=w1[:input_dim].astype(wd), w1_emb=w1[input_dim:].astype(wd), b1=b1,
        w2=w2.astype(wd), b2=b2,
        w3=w3.astype(wd), b3=b3,
        wh=wh.astype(wd), bh=bh,
        # unfused f32 heads kept only for the reference check
        wa=wa, ba=ba, wc=wc, bc=bc,
    )


def _reference_forward(obs, action_embed, p):
    x = jnp.concatenate([obs, action_embed], axis=-1)
    w1 = jnp.concatenate(
        [p["w1_obs"].astype(jnp.float32), p["w1_emb"].astype(jnp.float32)], axis=0)
    h = jnp.maximum(x @ w1 + p["b1"], 0.0)
    h = jnp.maximum(h @ p["w2"].astype(jnp.float32) + p["b2"], 0.0)
    h = jnp.maximum(h @ p["w3"].astype(jnp.float32) + p["b3"], 0.0)
    return h @ p["wa"] + p["ba"], h @ p["wc"] + p["bc"]


if __name__ == "__main__":
    input_dim = 16
    embedding_dim = 16
    hidden_dim = 128
    num_actions = 3
    batch = 8

    key = jax.random.PRNGKey(0)
    k_obs, k_emb, k_params = jax.random.split(key, 3)

    obs = jax.random.normal(k_obs, (batch, input_dim), jnp.float32)
    action_embed = jax.random.normal(k_emb, (batch, embedding_dim), jnp.float32)
    params = init_params(k_params, input_dim, embedding_dim, hidden_dim, num_actions)

    logits, value = elevator_actor_critic_forward(obs, action_embed, params,
                                                  num_actions)
    jax.block_until_ready((logits, value))

    ref_logits, ref_value = _reference_forward(obs, action_embed, params)
    assert logits.shape == (batch, num_actions)
    assert value.shape == (batch, 1)
    assert jnp.allclose(logits, ref_logits, atol=1e-4, rtol=1e-4)
    assert jnp.allclose(value, ref_value, atol=1e-4, rtol=1e-4)

    # Exercise the batch grid + padding path (grid=(2,), ragged batch).
    batch_big = 1000
    obs_b = jax.random.normal(jax.random.PRNGKey(1), (batch_big, input_dim), jnp.float32)
    emb_b = jax.random.normal(jax.random.PRNGKey(2), (batch_big, embedding_dim), jnp.float32)
    lg_b, va_b = elevator_actor_critic_forward(obs_b, emb_b, params, num_actions,
                                               block_b=512)
    jax.block_until_ready((lg_b, va_b))
    ref_lg_b, ref_va_b = _reference_forward(obs_b, emb_b, params)
    assert lg_b.shape == (batch_big, num_actions)
    assert va_b.shape == (batch_big, 1)
    assert jnp.allclose(lg_b, ref_lg_b, atol=1e-3, rtol=1e-3)
    assert jnp.allclose(va_b, ref_va_b, atol=1e-3, rtol=1e-3)

    print("KERNEL_OK")
</pallas_src>

<mosaic_0001>
module attributes {stable_mosaic.version = 11 : i64} {
  func.func @_actor_critic_kernel(%arg0: i32, %arg1: memref<8x16xf32, #tpu.memory_space<vmem>>, %arg2: memref<8x16xf32, #tpu.memory_space<vmem>>, %arg3: memref<16x128xf32, #tpu.memory_space<vmem>>, %arg4: memref<16x128xf32, #tpu.memory_space<vmem>>, %arg5: memref<1x128xf32, #tpu.memory_space<vmem>>, %arg6: memref<128x128xf32, #tpu.memory_space<vmem>>, %arg7: memref<1x128xf32, #tpu.memory_space<vmem>>, %arg8: memref<128x128xf32, #tpu.memory_space<vmem>>, %arg9: memref<1x128xf32, #tpu.memory_space<vmem>>, %arg10: memref<128x128xf32, #tpu.memory_space<vmem>>, %arg11: memref<1x128xf32, #tpu.memory_space<vmem>>, %arg12: memref<8x128xf32, #tpu.memory_space<vmem>>) attributes {dimension_semantics = [#tpu.dimension_semantics<parallel>], iteration_bounds = array<i64: 1>, scalar_prefetch = 0 : i64, scratch_operands = 0 : i64, tpu.core_type = #tpu.core_type<tc>, window_params = [{transform_indices = @transform_0, window_bounds = array<i64: 8, 16>}, {transform_indices = @transform_1, window_bounds = array<i64: 8, 16>}, {pipeline_mode = #tpu.pipeline_mode<synchronous>, transform_indices = @transform_2, window_bounds = array<i64: 16, 128>}, {pipeline_mode = #tpu.pipeline_mode<synchronous>, transform_indices = @transform_3, window_bounds = array<i64: 16, 128>}, {pipeline_mode = #tpu.pipeline_mode<synchronous>, transform_indices = @transform_4, window_bounds = array<i64: 1, 128>}, {pipeline_mode = #tpu.pipeline_mode<synchronous>, transform_indices = @transform_5, window_bounds = array<i64: 128, 128>}, {pipeline_mode = #tpu.pipeline_mode<synchronous>, transform_indices = @transform_6, window_bounds = array<i64: 1, 128>}, {pipeline_mode = #tpu.pipeline_mode<synchronous>, transform_indices = @transform_7, window_bounds = array<i64: 128, 128>}, {pipeline_mode = #tpu.pipeline_mode<synchronous>, transform_indices = @transform_8, window_bounds = array<i64: 1, 128>}, {pipeline_mode = #tpu.pipeline_mode<synchronous>, transform_indices = @transform_9, window_bounds = array<i64: 128, 128>}, {pipeline_mode = #tpu.pipeline_mode<synchronous>, transform_indices = @transform_10, window_bounds = array<i64: 1, 128>}, {transform_indices = @transform_11, window_bounds = array<i64: 8, 128>}]} {
    %c0 = arith.constant 0 : index
    %c0_0 = arith.constant 0 : index
    %0 = vector.load %arg1[%c0, %c0_0] : memref<8x16xf32, #tpu.memory_space<vmem>>, vector<8x16xf32>
    %c0_1 = arith.constant 0 : index
    %c0_2 = arith.constant 0 : index
    %1 = vector.load %arg3[%c0_1, %c0_2] : memref<16x128xf32, #tpu.memory_space<vmem>>, vector<16x128xf32>
    %cst = arith.constant dense<0.000000e+00> : vector<8x128xf32>
    %2 = tpu.matmul %0, %1, %cst {dimension_numbers = #tpu.dot_dimension_numbers<[1], [0], [0], [1], [0, 0, 1, 1], [], []>} : vector<8x16xf32>, vector<16x128xf32>, vector<8x128xf32> -> vector<8x128xf32>
    %c0_3 = arith.constant 0 : index
    %c0_4 = arith.constant 0 : index
    %3 = vector.load %arg2[%c0_3, %c0_4] : memref<8x16xf32, #tpu.memory_space<vmem>>, vector<8x16xf32>
    %c0_5 = arith.constant 0 : index
    %c0_6 = arith.constant 0 : index
    %4 = vector.load %arg4[%c0_5, %c0_6] : memref<16x128xf32, #tpu.memory_space<vmem>>, vector<16x128xf32>
    %cst_7 = arith.constant dense<0.000000e+00> : vector<8x128xf32>
    %5 = tpu.matmul %3, %4, %cst_7 {dimension_numbers = #tpu.dot_dimension_numbers<[1], [0], [0], [1], [0, 0, 1, 1], [], []>} : vector<8x16xf32>, vector<16x128xf32>, vector<8x128xf32> -> vector<8x128xf32>
    %6 = arith.addf %2, %5 : vector<8x128xf32>
    %c0_8 = arith.constant 0 : index
    %c0_9 = arith.constant 0 : index
    %7 = vector.load %arg5[%c0_8, %c0_9] : memref<1x128xf32, #tpu.memory_space<vmem>>, vector<1x128xf32>
    %8 = vector.broadcast %7 : vector<1x128xf32> to vector<8x128xf32>
    %9 = arith.addf %6, %8 : vector<8x128xf32>
    %cst_10 = arith.constant 0.000000e+00 : f32
    %10 = vector.broadcast %cst_10 : f32 to vector<8x128xf32>
    %11 = arith.maximumf %9, %10 : vector<8x128xf32>
    %c0_11 = arith.constant 0 : index
    %c0_12 = arith.constant 0 : index
    %12 = vector.load %arg6[%c0_11, %c0_12] : memref<128x128xf32, #tpu.memory_space<vmem>>, vector<128x128xf32>
    %cst_13 = arith.constant dense<0.000000e+00> : vector<8x128xf32>
    %13 = tpu.matmul %11, %12, %cst_13 {dimension_numbers = #tpu.dot_dimension_numbers<[1], [0], [0], [1], [0, 0, 1, 1], [], []>} : vector<8x128xf32>, vector<128x128xf32>, vector<8x128xf32> -> vector<8x128xf32>
    %c0_14 = arith.constant 0 : index
    %c0_15 = arith.constant 0 : index
    %14 = vector.load %arg7[%c0_14, %c0_15] : memref<1x128xf32, #tpu.memory_space<vmem>>, vector<1x128xf32>
    %15 = vector.broadcast %14 : vector<1x128xf32> to vector<8x128xf32>
    %16 = arith.addf %13, %15 : vector<8x128xf32>
    %cst_16 = arith.constant 0.000000e+00 : f32
    %17 = vector.broadcast %cst_16 : f32 to vector<8x128xf32>
    %18 = arith.maximumf %16, %17 : vector<8x128xf32>
    %c0_17 = arith.constant 0 : index
    %c0_18 = arith.constant 0 : index
    %19 = vector.load %arg8[%c0_17, %c0_18] : memref<128x128xf32, #tpu.memory_space<vmem>>, vector<128x128xf32>
    %cst_19 = arith.constant dense<0.000000e+00> : vector<8x128xf32>
    %20 = tpu.matmul %18, %19, %cst_19 {dimension_numbers = #tpu.dot_dimension_numbers<[1], [0], [0], [1], [0, 0, 1, 1], [], []>} : vector<8x128xf32>, vector<128x128xf32>, vector<8x128xf32> -> vector<8x128xf32>
    %c0_20 = arith.constant 0 : index
    %c0_21 = arith.constant 0 : index
    %21 = vector.load %arg9[%c0_20, %c0_21] : memref<1x128xf32, #tpu.memory_space<vmem>>, vector<1x128xf32>
    %22 = vector.broadcast %21 : vector<1x128xf32> to vector<8x128xf32>
    %23 = arith.addf %20, %22 : vector<8x128xf32>
    %cst_22 = arith.constant 0.000000e+00 : f32
    %24 = vector.broadcast %cst_22 : f32 to vector<8x128xf32>
    %25 = arith.maximumf %23, %24 : vector<8x128xf32>
    %c0_23 = arith.constant 0 : index
    %c0_24 = arith.constant 0 : index
    %26 = vector.load %arg10[%c0_23, %c0_24] : memref<128x128xf32, #tpu.memory_space<vmem>>, vector<128x128xf32>
    %cst_25 = arith.constant dense<0.000000e+00> : vector<8x128xf32>
    %27 = tpu.matmul %25, %26, %cst_25 {dimension_numbers = #tpu.dot_dimension_numbers<[1], [0], [0], [1], [0, 0, 1, 1], [], []>} : vector<8x128xf32>, vector<128x128xf32>, vector<8x128xf32> -> vector<8x128xf32>
    %c0_26 = arith.constant 0 : index
    %c0_27 = arith.constant 0 : index
    %28 = vector.load %arg11[%c0_26, %c0_27] : memref<1x128xf32, #tpu.memory_space<vmem>>, vector<1x128xf32>
    %29 = vector.broadcast %28 : vector<1x128xf32> to vector<8x128xf32>
    %30 = arith.addf %27, %29 : vector<8x128xf32>
    %c0_28 = arith.constant 0 : index
    %c0_29 = arith.constant 0 : index
    %31 = vector.load %arg12[%c0_28, %c0_29] : memref<8x128xf32, #tpu.memory_space<vmem>>, vector<8x128xf32>
    tpu.vector_store %arg12[%c0_28, %c0_29], %30 {strides = array<i32>} : memref<8x128xf32, #tpu.memory_space<vmem>>, vector<8x128xf32>,
    return
  }
  func.func @transform_0(%arg0: i32) -> (i32, i32) {
    %c0_i32 = arith.constant 0 : i32
    %c0_i32_0 = arith.constant 0 : i32
    return %arg0, %c0_i32 : i32, i32
  }
  func.func @transform_1(%arg0: i32) -> (i32, i32) {
    %c0_i32 = arith.constant 0 : i32
    %c0_i32_0 = arith.constant 0 : i32
    return %arg0, %c0_i32 : i32, i32
  }
  func.func @transform_2(%arg0: i32) -> (i32, i32) {
    %c0_i32 = arith.constant 0 : i32
    %c0_i32_0 = arith.constant 0 : i32
    %c0_i32_1 = arith.constant 0 : i32
    return %c0_i32, %c0_i32_0 : i32, i32
  }
  func.func @transform_3(%arg0: i32) -> (i32, i32) {
    %c0_i32 = arith.constant 0 : i32
    %c0_i32_0 = arith.constant 0 : i32
    %c0_i32_1 = arith.constant 0 : i32
    return %c0_i32, %c0_i32_0 : i32, i32
  }
  func.func @transform_4(%arg0: i32) -> (i32, i32) {
    %c0_i32 = arith.constant 0 : i32
    %c0_i32_0 = arith.constant 0 : i32
    %c0_i32_1 = arith.constant 0 : i32
    return %c0_i32, %c0_i32_0 : i32, i32
  }
  func.func @transform_5(%arg0: i32) -> (i32, i32) {
    %c0_i32 = arith.constant 0 : i32
    %c0_i32_0 = arith.constant 0 : i32
    %c0_i32_1 = arith.constant 0 : i32
    return %c0_i32, %c0_i32_0 : i32, i32
  }
  func.func @transform_6(%arg0: i32) -> (i32, i32) {
    %c0_i32 = arith.constant 0 : i32
    %c0_i32_0 = arith.constant 0 : i32
    %c0_i32_1 = arith.constant 0 : i32
    return %c0_i32, %c0_i32_0 : i32, i32
  }
  func.func @transform_7(%arg0: i32) -> (i32, i32) {
    %c0_i32 = arith.constant 0 : i32
    %c0_i32_0 = arith.constant 0 : i32
    %c0_i32_1 = arith.constant 0 : i32
    return %c0_i32, %c0_i32_0 : i32, i32
  }
  func.func @transform_8(%arg0: i32) -> (i32, i32) {
    %c0_i32 = arith.constant 0 : i32
    %c0_i32_0 = arith.constant 0 : i32
    %c0_i32_1 = arith.constant 0 : i32
    return %c0_i32, %c0_i32_0 : i32, i32
  }
  func.func @transform_9(%arg0: i32) -> (i32, i32) {
    %c0_i32 = arith.constant 0 : i32
    %c0_i32_0 = arith.constant 0 : i32
    %c0_i32_1 = arith.constant 0 : i32
    return %c0_i32, %c0_i32_0 : i32, i32
  }
  func.func @transform_10(%arg0: i32) -> (i32, i32) {
    %c0_i32 = arith.constant 0 : i32
    %c0_i32_0 = arith.constant 0 : i32
    %c0_i32_1 = arith.constant 0 : i32
    return %c0_i32, %c0_i32_0 : i32, i32
  }
  func.func @transform_11(%arg0: i32) -> (i32, i32) {
    %c0_i32 = arith.constant 0 : i32
    %c0_i32_0 = arith.constant 0 : i32
    return %arg0, %c0_i32 : i32, i32
  }
}

</mosaic_0001>

<llo_original>
// kernel: tpu_custom_call.1
$region0: #{tpu_custom_call.1}
  #allocation0 [shape = 'u32[]', space=smem, size = 0x4, offset = 0x4, fixed_abs, tag = 'smem constant byte address 0x4 - core index']
  #allocation1 [shape = 'u32[144,128]{1,0:T(1,128)}', space=vmem, size = 0x12000, scoped, tag = 'internal scratch']
  %s0 = inlined_call_operand.hbm [shape: f32[8,16], index: 0, kind: input, shape index: {}]
  %s1 = inlined_call_operand.hbm [shape: f32[8,16], index: 1, kind: input, shape index: {}]
  %s2 = inlined_call_operand.hbm [shape: f32[16,128], index: 2, kind: input, shape index: {}]
  %s3 = inlined_call_operand.hbm [shape: f32[16,128], index: 3, kind: input, shape index: {}]
  %s4 = inlined_call_operand.vmem [shape: f32[1,128], index: 4, kind: input, shape index: {}]
  %s5 = inlined_call_operand.hbm [shape: f32[128,128], index: 5, kind: input, shape index: {}]
  %s6 = inlined_call_operand.vmem [shape: f32[1,128], index: 6, kind: input, shape index: {}]
  %s7 = inlined_call_operand.hbm [shape: f32[128,128], index: 7, kind: input, shape index: {}]
  %s8 = inlined_call_operand.vmem [shape: f32[1,128], index: 8, kind: input, shape index: {}]
  %s9 = inlined_call_operand.hbm [shape: f32[128,128], index: 9, kind: input, shape index: {}]
  %s10 = inlined_call_operand.vmem [shape: f32[1,128], index: 10, kind: input, shape index: {}]
  %s11 = inlined_call_operand.hbm [shape: f32[8,128], index: 11, kind: output, shape index: {}]
  %s12 = sld [smem:[#allocation0]]
  $region82: #{tpu_custom_call.1} parent=0
    _
  %s14 = ssub.s32 1, %s12
  %s15 = scalar_select 0, %s14, %s12
  $region1: #{tpu_custom_call.1} parent=0
    #allocation2 [shape = 'u8[4096]{0}', space=vmem, size = 0x1000, scoped, tag = 'input window, operand 0, single buffered']
    #allocation3 [shape = 's32[1]{0}', space=sflag, size = 0x4, scoped, tag = 'scoped memory for tpu_custom_call.1']
    #allocation4 [shape = 's32[1]{0}', space=sflag, size = 0x4, scoped, tag = 'scoped memory for tpu_custom_call.1']
    #allocation5 [shape = 'u8[4096]{0}', space=vmem, size = 0x1000, scoped, tag = 'input window, operand 1, single buffered']
    #allocation6 [shape = 's32[1]{0}', space=sflag, size = 0x4, scoped, tag = 'scoped memory for tpu_custom_call.1']
    #allocation7 [shape = 'u8[8192]{0}', space=vmem, size = 0x2000, scoped, tag = 'input window, operand 2, single buffered']
    #allocation8 [shape = 'u8[8192]{0}', space=vmem, size = 0x2000, scoped, tag = 'input window, operand 3, single buffered']
    #allocation9 [shape = 's32[1]{0}', space=sflag, size = 0x4, scoped, tag = 'scoped memory for tpu_custom_call.1']
    #allocation10 [shape = 'u8[65536]{0}', space=vmem, size = 0x10000, scoped, tag = 'input window, operand 5, single buffered']
    #allocation11 [shape = 'u8[65536]{0}', space=vmem, size = 0x10000, scoped, tag = 'input window, operand 7, single buffered']
    #allocation12 [shape = 's32[1]{0}', space=sflag, size = 0x4, scoped, tag = 'scoped memory for tpu_custom_call.1']
    #allocation13 [shape = 'u8[65536]{0}', space=vmem, size = 0x10000, scoped, tag = 'input window, operand 9, single buffered']
    #allocation14 [shape = 'u8[4096]{0}', space=vmem, size = 0x1000, scoped, tag = 'output window, operand 0, single buffered']
    %16 = vsyncpa [#allocation3], 0
    %17 = vsyncpa [#allocation6], 0
    %18 = vsyncpa [#allocation9], 0
    %19 = vsyncpa [#allocation12], 0
    %20 = vsyncpa [#allocation4], 0
    // Predicated region
    $region2: #{tpu_custom_call.1} parent=1 // pred_check
      _
    $region3: #{tpu_custom_call.1} parent=1 // pred_check_branch
      %22 = sbr.rel (0) target = $region5
    $region4: #{tpu_custom_call.1} parent=1 // pred_region
      %s24 = ssub.s32 128, 128
      %25 = vsyncadd [#allocation3], %s24
      %s27 = sshll.u32 [#allocation2], 4
      %s28 = int_to_ptr.vmem [resolvable:$true] %s27
      %30 = dma.hbm_to_vmem [thread:$0]  %s0, 128, %s28, [#allocation3]
    $region5: #{tpu_custom_call.1} parent=1 // pred_fallthru
      _
    // Predicated region
    $region6: #{tpu_custom_call.1} parent=1 // pred_check
      _
    $region7: #{tpu_custom_call.1} parent=1 // pred_check_branch
      %32 = sbr.rel (0) target = $region9
    $region8: #{tpu_custom_call.1} parent=1 // pred_region
      %s34 = ssub.s32 128, 128
      %35 = vsyncadd [#allocation6], %s34
      %s37 = sshll.u32 [#allocation5], 4
      %s38 = int_to_ptr.vmem [resolvable:$true] %s37
      %40 = dma.hbm_to_vmem [thread:$0]  %s1, 128, %s38, [#allocation6]
    $region9: #{tpu_custom_call.1} parent=1 // pred_fallthru
      _
    // Predicated region
    $region10: #{tpu_custom_call.1} parent=1 // pred_check
      _
    $region11: #{tpu_custom_call.1} parent=1 // pred_check_branch
      %42 = sbr.rel (0) target = $region13
    $region12: #{tpu_custom_call.1} parent=1 // pred_region
      %s44 = ssub.s32 256, 256
      %45 = vsyncadd [#allocation6], %s44
      %s46 = sshll.u32 [#allocation7], 4
      %s47 = int_to_ptr.vmem [resolvable:$true] %s46
      %52 = dma.hbm_to_vmem [thread:$0]  %s2, 256, %s47, [#allocation6], 128, 128, 8
    $region13: #{tpu_custom_call.1} parent=1 // pred_fallthru
      _
    // Predicated region
    $region14: #{tpu_custom_call.1} parent=1 // pred_check
      _
    $region15: #{tpu_custom_call.1} parent=1 // pred_check_branch
      %54 = sbr.rel (0) target = $region17
    $region16: #{tpu_custom_call.1} parent=1 // pred_region
      %s56 = ssub.s32 256, 256
      %57 = vsyncadd [#allocation9], %s56
      %s58 = sshll.u32 [#allocation8], 4
      %s59 = int_to_ptr.vmem [resolvable:$true] %s58
      %64 = dma.hbm_to_vmem [thread:$0]  %s3, 256, %s59, [#allocation9], 128, 128, 8
    $region17: #{tpu_custom_call.1} parent=1 // pred_fallthru
      _
    // Predicated region
    $region18: #{tpu_custom_call.1} parent=1 // pred_check
      _
    $region19: #{tpu_custom_call.1} parent=1 // pred_check_branch
      %66 = sbr.rel (0) target = $region21
    $region20: #{tpu_custom_call.1} parent=1 // pred_region
      _
    $region21: #{tpu_custom_call.1} parent=1 // pred_fallthru
      _
    // Predicated region
    $region22: #{tpu_custom_call.1} parent=1 // pred_check
      _
    $region23: #{tpu_custom_call.1} parent=1 // pred_check_branch
      %68 = sbr.rel (0) target = $region25
    $region24: #{tpu_custom_call.1} parent=1 // pred_region
      %s70 = ssub.s32 2048, 2048
      %71 = vsyncadd [#allocation9], %s70
      %s72 = sshll.u32 [#allocation10], 4
      %s73 = int_to_ptr.vmem [resolvable:$true] %s72
      %78 = dma.hbm_to_vmem [thread:$0]  %s5, 2048, %s73, [#allocation9], 128, 128, 8
    $region25: #{tpu_custom_call.1} parent=1 // pred_fallthru
      _
    // Predicated region
    $region26: #{tpu_custom_call.1} parent=1 // pred_check
      _
    $region27: #{tpu_custom_call.1} parent=1 // pred_check_branch
      %80 = sbr.rel (0) target = $region29
    $region28: #{tpu_custom_call.1} parent=1 // pred_region
      _
    $region29: #{tpu_custom_call.1} parent=1 // pred_fallthru
      _
    // Predicated region
    $region30: #{tpu_custom_call.1} parent=1 // pred_check
      _
    $region31: #{tpu_custom_call.1} parent=1 // pred_check_branch
      %82 = sbr.rel (0) target = $region33
    $region32: #{tpu_custom_call.1} parent=1 // pred_region
      %s84 = ssub.s32 2048, 2048
      %85 = vsyncadd [#allocation12], %s84
      %s86 = sshll.u32 [#allocation11], 4
      %s87 = int_to_ptr.vmem [resolvable:$true] %s86
      %92 = dma.hbm_to_vmem [thread:$0]  %s7, 2048, %s87, [#allocation12], 128, 128, 8
    $region33: #{tpu_custom_call.1} parent=1 // pred_fallthru
      _
    // Predicated region
    $region34: #{tpu_custom_call.1} parent=1 // pred_check
      _
    $region35: #{tpu_custom_call.1} parent=1 // pred_check_branch
      %94 = sbr.rel (0) target = $region37
    $region36: #{tpu_custom_call.1} parent=1 // pred_region
      _
    $region37: #{tpu_custom_call.1} parent=1 // pred_fallthru
      _
    // Predicated region
    $region38: #{tpu_custom_call.1} parent=1 // pred_check
      _
    $region39: #{tpu_custom_call.1} parent=1 // pred_check_branch
      %96 = sbr.rel (0) target = $region41
    $region40: #{tpu_custom_call.1} parent=1 // pred_region
      %s98 = ssub.s32 2048, 2048
      %99 = vsyncadd [#allocation12], %s98
      %s100 = sshll.u32 [#allocation13], 4
      %s101 = int_to_ptr.vmem [resolvable:$true] %s100
      %106 = dma.hbm_to_vmem [thread:$0]  %s9, 2048, %s101, [#allocation12], 128, 128, 8
    $region41: #{tpu_custom_call.1} parent=1 // pred_fallthru
      _
    // Predicated region
    $region42: #{tpu_custom_call.1} parent=1 // pred_check
      _
    $region43: #{tpu_custom_call.1} parent=1 // pred_check_branch
      %108 = sbr.rel (0) target = $region45
    $region44: #{tpu_custom_call.1} parent=1 // pred_region
      _
    $region45: #{tpu_custom_call.1} parent=1 // pred_fallthru
      _
    // Predicated region
    $region46: #{tpu_custom_call.1} parent=1 // pred_check
      _
    $region47: #{tpu_custom_call.1} parent=1 // pred_check_branch
      %110 = sbr.rel (0) target = $region49
    $region48: #{tpu_custom_call.1} parent=1 // pred_region
      %111 = dma.done [#allocation3], 128
    $region49: #{tpu_custom_call.1} parent=1 // pred_fallthru
      _
    // Predicated region
    $region50: #{tpu_custom_call.1} parent=1 // pred_check
      _
    $region51: #{tpu_custom_call.1} parent=1 // pred_check_branch
      %113 = sbr.rel (0) target = $region53
    $region52: #{tpu_custom_call.1} parent=1 // pred_region
      %114 = dma.done [#allocation6], 128
    $region53: #{tpu_custom_call.1} parent=1 // pred_fallthru
      _
    // Predicated region
    $region54: #{tpu_custom_call.1} parent=1 // pred_check
      _
    $region55: #{tpu_custom_call.1} parent=1 // pred_check_branch
      %116 = sbr.rel (0) target = $region57
    $region56: #{tpu_custom_call.1} parent=1 // pred_region
      %117 = dma.done [#allocation6], 256
    $region57: #{tpu_custom_call.1} parent=1 // pred_fallthru
      _
    // Predicated region
    $region58: #{tpu_custom_call.1} parent=1 // pred_check
      _
    $region59: #{tpu_custom_call.1} parent=1 // pred_check_branch
      %119 = sbr.rel (0) target = $region61
    $region60: #{tpu_custom_call.1} parent=1 // pred_region
      %120 = dma.done [#allocation9], 256
    $region61: #{tpu_custom_call.1} parent=1 // pred_fallthru
      _
    // Predicated region
    $region62: #{tpu_custom_call.1} parent=1 // pred_check
      _
    $region63: #{tpu_custom_call.1} parent=1 // pred_check_branch
      %122 = sbr.rel (0) target = $region65
    $region64: #{tpu_custom_call.1} parent=1 // pred_region
      %123 = dma.done [#allocation9], 2048
    $region65: #{tpu_custom_call.1} parent=1 // pred_fallthru
      _
    // Predicated region
    $region66: #{tpu_custom_call.1} parent=1 // pred_check
      _
    $region67: #{tpu_custom_call.1} parent=1 // pred_check_branch
      %125 = sbr.rel (0) target = $region69
    $region68: #{tpu_custom_call.1} parent=1 // pred_region
      %126 = dma.done [#allocation12], 2048
    $region69: #{tpu_custom_call.1} parent=1 // pred_fallthru
      _
    // Predicated region
    $region70: #{tpu_custom_call.1} parent=1 // pred_check
      _
    $region71: #{tpu_custom_call.1} parent=1 // pred_check_branch
      %128 = sbr.rel (0) target = $region73
    $region72: #{tpu_custom_call.1} parent=1 // pred_region
      %129 = dma.done [#allocation12], 2048
    $region73: #{tpu_custom_call.1} parent=1 // pred_fallthru
      _
    %v130 = vld [vmem:[#allocation2] sm:$0xff]
    %v131 = vld [vmem:[#allocation7] sm:$0xff]
    %v132 = vld [vmem:[#allocation7 + $0x8] sm:$0xff]
    %v133 = vld [vmem:[#allocation5] sm:$0xff]
    %v134 = vld [vmem:[#allocation8] sm:$0xff]
    %v135 = vld [vmem:[#allocation8 + $0x8] sm:$0xff]
    %vm136 = vcmask 130048
    %v138 = vsel %vm136, %v133, 0
    %140 = vmatprep.subr.mxu0 0.0
    %141 = vmatpush1.msra.mxu0 %v134
    %142 = vmatprep.subr.mxu0 0.0
    %143 = vmatpush1.msra.mxu0 %v135
    %144 = vmatprep.subr.mxu0 0.0
    %145 = vmatpush1.msra.mxu0 0.0
    %146 = vmatprep.subr.mxu0 0.0
    %147 = vmatpush1.msra.mxu0 0.0
    %148 = vmatprep.subr.mxu0 0.0
    %149 = vmatpush1.msra.mxu0 0.0
    %150 = vmatprep.subr.mxu0 0.0
    %151 = vmatpush1.msra.mxu0 0.0
    %152 = vmatprep.subr.mxu0 0.0
    %153 = vmatpush1.msra.mxu0 0.0
    %154 = vmatprep.subr.mxu0 0.0
    %155 = vmatpush1.msra.mxu0 0.0
    %156 = vmatprep.subr.mxu0 0.0
    %157 = vmatpush1.msra.mxu0 0.0
    %158 = vmatprep.subr.mxu0 0.0
    %159 = vmatpush1.msra.mxu0 0.0
    %160 = vmatprep.subr.mxu0 0.0
    %161 = vmatpush1.msra.mxu0 0.0
    %162 = vmatprep.subr.mxu0 0.0
    %163 = vmatpush1.msra.mxu0 0.0
    %164 = vmatprep.subr.mxu0 0.0
    %165 = vmatpush1.msra.mxu0 0.0
    %166 = vmatprep.subr.mxu0 0.0
    %167 = vmatpush1.msra.mxu0 0.0
    %168 = vmatprep.subr.mxu0 0.0
    %169 = vmatpush1.msra.mxu0 0.0
    %170 = vmatprep.subr.mxu0 0.0
    %171 = vmatpush1.msra.mxu0 0.0
    %172 = vmatprep.subr.mxu0 0.0
    %173 = vmatpush1.msra.mxu0 0.0
    %174 = vmatprep.subr.mxu0 0.0
    %175 = vmatpush1.msra.mxu0 0.0
    %176 = vmatprep.subr.mxu0 0.0
    %177 = vmatpush1.msra.mxu0 0.0
    %178 = vmatprep.subr.mxu0 0.0
    %179 = vmatpush1.msra.mxu0 0.0
    %180 = vmatprep.subr.mxu0 0.0
    %181 = vmatpush1.msra.mxu0 0.0
    %182 = vmatprep.subr.mxu0 0.0
    %183 = vmatpush1.msra.mxu0 0.0
    %184 = vmatprep.subr.mxu0 0.0
    %185 = vmatpush1.msra.mxu0 0.0
    %186 = vmatprep.subr.mxu0 0.0
    %187 = vmatpush1.msra.mxu0 0.0
    %188 = vmatprep.subr.mxu0 0.0
    %189 = vmatpush1.msra.mxu0 0.0
    %190 = vmatprep.subr.mxu0 0.0
    %191 = vmatpush1.msra.mxu0 0.0
    %192 = vmatprep.subr.mxu0 0.0
    %193 = vmatpush1.msra.mxu0 0.0
    %194 = vmatprep.subr.mxu0 0.0
    %195 = vmatpush1.msra.mxu0 0.0
    %196 = vmatprep.subr.mxu0 0.0
    %197 = vmatpush1.msra.mxu0 0.0
    %198 = vmatprep.subr.mxu0 0.0
    %199 = vmatpush1.msra.mxu0 0.0
    %200 = vmatprep.subr.mxu0 0.0
    %201 = vmatpush1.msra.mxu0 0.0
    %202 = vmatprep.subr.mxu0 0.0
    %203 = vmatpush1.msra.mxu0 0.0
    %204 = vmatprep.mubr.f32.mxu0 0.0
    %205 = vmatmul.mubr.f32.gmra.mrb[0].mxu0 %v138
    %v206 = vpop.f32.mrb[0].mxu0
    %v207 = vadd.f32 0.0, %v206
    %v208 = vpop.f32.mrb[0].mxu0
    %209 = vdwg.mxu0
    %v211 = vsel %vm136, %v130, 0
    %213 = vmatprep.subr.mxu0 0.0
    %214 = vmatpush1.msra.mxu0 %v131
    %215 = vmatprep.subr.mxu0 0.0
    %216 = vmatpush1.msra.mxu0 %v132
    %217 = vmatprep.subr.mxu0 0.0
    %218 = vmatpush1.msra.mxu0 0.0
    %219 = vmatprep.subr.mxu0 0.0
    %220 = vmatpush1.msra.mxu0 0.0
    %221 = vmatprep.subr.mxu0 0.0
    %222 = vmatpush1.msra.mxu0 0.0
    %223 = vmatprep.subr.mxu0 0.0
    %224 = vmatpush1.msra.mxu0 0.0
    %225 = vmatprep.subr.mxu0 0.0
    %226 = vmatpush1.msra.mxu0 0.0
    %227 = vmatprep.subr.mxu0 0.0
    %228 = vmatpush1.msra.mxu0 0.0
    %229 = vmatprep.subr.mxu0 0.0
    %230 = vmatpush1.msra.mxu0 0.0
    %231 = vmatprep.subr.mxu0 0.0
    %232 = vmatpush1.msra.mxu0 0.0
    %233 = vmatprep.subr.mxu0 0.0
    %234 = vmatpush1.msra.mxu0 0.0
    %235 = vmatprep.subr.mxu0 0.0
    %236 = vmatpush1.msra.mxu0 0.0
    %237 = vmatprep.subr.mxu0 0.0
    %238 = vmatpush1.msra.mxu0 0.0
    %239 = vmatprep.subr.mxu0 0.0
    %240 = vmatpush1.msra.mxu0 0.0
    %241 = vmatprep.subr.mxu0 0.0
    %242 = vmatpush1.msra.mxu0 0.0
    %243 = vmatprep.subr.mxu0 0.0
    %244 = vmatpush1.msra.mxu0 0.0
    %245 = vmatprep.subr.mxu0 0.0
    %246 = vmatpush1.msra.mxu0 0.0
    %247 = vmatprep.subr.mxu0 0.0
    %248 = vmatpush1.msra.mxu0 0.0
    %249 = vmatprep.subr.mxu0 0.0
    %250 = vmatpush1.msra.mxu0 0.0
    %251 = vmatprep.subr.mxu0 0.0
    %252 = vmatpush1.msra.mxu0 0.0
    %253 = vmatprep.subr.mxu0 0.0
    %254 = vmatpush1.msra.mxu0 0.0
    %255 = vmatprep.subr.mxu0 0.0
    %256 = vmatpush1.msra.mxu0 0.0
    %257 = vmatprep.subr.mxu0 0.0
    %258 = vmatpush1.msra.mxu0 0.0
    %259 = vmatprep.subr.mxu0 0.0
    %260 = vmatpush1.msra.mxu0 0.0
    %261 = vmatprep.subr.mxu0 0.0
    %262 = vmatpush1.msra.mxu0 0.0
    %263 = vmatprep.subr.mxu0 0.0
    %264 = vmatpush1.msra.mxu0 0.0
    %265 = vmatprep.subr.mxu0 0.0
    %266 = vmatpush1.msra.mxu0 0.0
    %267 = vmatprep.subr.mxu0 0.0
    %268 = vmatpush1.msra.mxu0 0.0
    %269 = vmatprep.subr.mxu0 0.0
    %270 = vmatpush1.msra.mxu0 0.0
    %271 = vmatprep.subr.mxu0 0.0
    %272 = vmatpush1.msra.mxu0 0.0
    %273 = vmatprep.subr.mxu0 0.0
    %274 = vmatpush1.msra.mxu0 0.0
    %275 = vmatprep.subr.mxu0 0.0
    %276 = vmatpush1.msra.mxu0 0.0
    %277 = vmatprep.mubr.f32.mxu0 0.0
    %278 = vmatmul.mubr.f32.gmra.mrb[0].mxu0 %v211
    %v279 = vpop.f32.mrb[0].mxu0
    %v280 = vadd.f32 %v207, %v279
    %v281 = vpop.f32.mrb[0].mxu0
    %282 = vdwg.mxu0
    %v283 = vld [vmem:[%s4] sm:$0x1]
    %v285 = vlaneseq
    %v286 = vshrl.u32 %v285, 7
    %v287 = vsub.s32 0, %v286
    %v288 = vrot.slane %v283, %v287
    %v290 = vadd.f32 %v280, %v288
    %v291 = vmax.f32 %v290, 0.0
    %v292 = vld [vmem:[#allocation10] sm:$0xff]
    %v293 = vld [vmem:[#allocation10 + $0x8] sm:$0xff]
    %v294 = vld [vmem:[#allocation10 + $0x10] sm:$0xff]
    %v295 = vld [vmem:[#allocation10 + $0x18] sm:$0xff]
    %v296 = vld [vmem:[#allocation10 + $0x20] sm:$0xff]
    %v297 = vld [vmem:[#allocation10 + $0x28] sm:$0xff]
    %v298 = vld [vmem:[#allocation10 + $0x30] sm:$0xff]
    %v299 = vld [vmem:[#allocation10 + $0x38] sm:$0xff]
    %v300 = vld [vmem:[#allocation10 + $0x40] sm:$0xff]
    %v301 = vld [vmem:[#allocation10 + $0x48] sm:$0xff]
    %v302 = vld [vmem:[#allocation10 + $0x50] sm:$0xff]
    %v303 = vld [vmem:[#allocation10 + $0x58] sm:$0xff]
    %v304 = vld [vmem:[#allocation10 + $0x60] sm:$0xff]
    %v305 = vld [vmem:[#allocation10 + $0x68] sm:$0xff]
    %v306 = vld [vmem:[#allocation10 + $0x70] sm:$0xff]
    %v307 = vld [vmem:[#allocation10 + $0x78] sm:$0xff]
    %v308 = vld [vmem:[%s6] sm:$0x1]
    %v310 = vlaneseq
    %v311 = vshrl.u32 %v310, 7
    %v312 = vsub.s32 0, %v311
    %v313 = vrot.slane %v308, %v312
    %315 = vmatprep.subr.mxu0 0.0
    %316 = vmatpush1.msra.mxu0 %v292
    %317 = vmatprep.subr.mxu0 0.0
    %318 = vmatpush1.msra.mxu0 %v293
    %319 = vmatprep.subr.mxu0 0.0
    %320 = vmatpush1.msra.mxu0 %v294
    %321 = vmatprep.subr.mxu0 0.0
    %322 = vmatpush1.msra.mxu0 %v295
    %323 = vmatprep.subr.mxu0 0.0
    %324 = vmatpush1.msra.mxu0 %v296
    %325 = vmatprep.subr.mxu0 0.0
    %326 = vmatpush1.msra.mxu0 %v297
    %327 = vmatprep.subr.mxu0 0.0
    %328 = vmatpush1.msra.mxu0 %v298
    %329 = vmatprep.subr.mxu0 0.0
    %330 = vmatpush1.msra.mxu0 %v299
    %331 = vmatprep.subr.mxu0 0.0
    %332 = vmatpush1.msra.mxu0 %v300
    %333 = vmatprep.subr.mxu0 0.0
    %334 = vmatpush1.msra.mxu0 %v301
    %335 = vmatprep.subr.mxu0 0.0
    %336 = vmatpush1.msra.mxu0 %v302
    %337 = vmatprep.subr.mxu0 0.0
    %338 = vmatpush1.msra.mxu0 %v303
    %339 = vmatprep.subr.mxu0 0.0
    %340 = vmatpush1.msra.mxu0 %v304
    %341 = vmatprep.subr.mxu0 0.0
    %342 = vmatpush1.msra.mxu0 %v305
    %343 = vmatprep.subr.mxu0 0.0
    %344 = vmatpush1.msra.mxu0 %v306
    %345 = vmatprep.subr.mxu0 0.0
    %346 = vmatpush1.msra.mxu0 %v307
    %347 = vmatprep.subr.mxu0 0.0
    %348 = vmatpush1.msra.mxu0 0.0
    %349 = vmatprep.subr.mxu0 0.0
    %350 = vmatpush1.msra.mxu0 0.0
    %351 = vmatprep.subr.mxu0 0.0
    %352 = vmatpush1.msra.mxu0 0.0
    %353 = vmatprep.subr.mxu0 0.0
    %354 = vmatpush1.msra.mxu0 0.0
    %355 = vmatprep.subr.mxu0 0.0
    %356 = vmatpush1.msra.mxu0 0.0
    %357 = vmatprep.subr.mxu0 0.0
    %358 = vmatpush1.msra.mxu0 0.0
    %359 = vmatprep.subr.mxu0 0.0
    %360 = vmatpush1.msra.mxu0 0.0
    %361 = vmatprep.subr.mxu0 0.0
    %362 = vmatpush1.msra.mxu0 0.0
    %363 = vmatprep.subr.mxu0 0.0
    %364 = vmatpush1.msra.mxu0 0.0
    %365 = vmatprep.subr.mxu0 0.0
    %366 = vmatpush1.msra.mxu0 0.0
    %367 = vmatprep.subr.mxu0 0.0
    %368 = vmatpush1.msra.mxu0 0.0
    %369 = vmatprep.subr.mxu0 0.0
    %370 = vmatpush1.msra.mxu0 0.0
    %371 = vmatprep.subr.mxu0 0.0
    %372 = vmatpush1.msra.mxu0 0.0
    %373 = vmatprep.subr.mxu0 0.0
    %374 = vmatpush1.msra.mxu0 0.0
    %375 = vmatprep.subr.mxu0 0.0
    %376 = vmatpush1.msra.mxu0 0.0
    %377 = vmatprep.subr.mxu0 0.0
    %378 = vmatpush1.msra.mxu0 0.0
    %379 = vmatprep.mubr.f32.mxu0 0.0
    %380 = vmatmul.mubr.f32.gmra.mrb[0].mxu0 %v291
    %v381 = vpop.f32.mrb[0].mxu0
    %v382 = vadd.f32 %v313, %v381
    %v383 = vpop.f32.mrb[0].mxu0
    %384 = vdwg.mxu0
    %v385 = vmax.f32 %v382, 0.0
    %v386 = vld [vmem:[#allocation11] sm:$0xff]
    %v387 = vld [vmem:[#allocation11 + $0x8] sm:$0xff]
    %v388 = vld [vmem:[#allocation11 + $0x10] sm:$0xff]
    %v389 = vld [vmem:[#allocation11 + $0x18] sm:$0xff]
    %v390 = vld [vmem:[#allocation11 + $0x20] sm:$0xff]
    %v391 = vld [vmem:[#allocation11 + $0x28] sm:$0xff]
    %v392 = vld [vmem:[#allocation11 + $0x30] sm:$0xff]
    %v393 = vld [vmem:[#allocation11 + $0x38] sm:$0xff]
    %v394 = vld [vmem:[#allocation11 + $0x40] sm:$0xff]
    %v395 = vld [vmem:[#allocation11 + $0x48] sm:$0xff]
    %v396 = vld [vmem:[#allocation11 + $0x50] sm:$0xff]
    %v397 = vld [vmem:[#allocation11 + $0x58] sm:$0xff]
    %v398 = vld [vmem:[#allocation11 + $0x60] sm:$0xff]
    %v399 = vld [vmem:[#allocation11 + $0x68] sm:$0xff]
    %v400 = vld [vmem:[#allocation11 + $0x70] sm:$0xff]
    %v401 = vld [vmem:[#allocation11 + $0x78] sm:$0xff]
    %v402 = vld [vmem:[%s8] sm:$0x1]
    %v404 = vlaneseq
    %v405 = vshrl.u32 %v404, 7
    %v406 = vsub.s32 0, %v405
    %v407 = vrot.slane %v402, %v406
    %409 = vmatprep.subr.mxu0 0.0
    %410 = vmatpush1.msra.mxu0 %v386
    %411 = vmatprep.subr.mxu0 0.0
    %412 = vmatpush1.msra.mxu0 %v387
    %413 = vmatprep.subr.mxu0 0.0
    %414 = vmatpush1.msra.mxu0 %v388
    %415 = vmatprep.subr.mxu0 0.0
    %416 = vmatpush1.msra.mxu0 %v389
    %417 = vmatprep.subr.mxu0 0.0
    %418 = vmatpush1.msra.mxu0 %v390
    %419 = vmatprep.subr.mxu0 0.0
    %420 = vmatpush1.msra.mxu0 %v391
    %421 = vmatprep.subr.mxu0 0.0
    %422 = vmatpush1.msra.mxu0 %v392
    %423 = vmatprep.subr.mxu0 0.0
    %424 = vmatpush1.msra.mxu0 %v393
    %425 = vmatprep.subr.mxu0 0.0
    %426 = vmatpush1.msra.mxu0 %v394
    %427 = vmatprep.subr.mxu0 0.0
    %428 = vmatpush1.msra.mxu0 %v395
    %429 = vmatprep.subr.mxu0 0.0
    %430 = vmatpush1.msra.mxu0 %v396
    %431 = vmatprep.subr.mxu0 0.0
    %432 = vmatpush1.msra.mxu0 %v397
    %433 = vmatprep.subr.mxu0 0.0
    %434 = vmatpush1.msra.mxu0 %v398
    %435 = vmatprep.subr.mxu0 0.0
    %436 = vmatpush1.msra.mxu0 %v399
    %437 = vmatprep.subr.mxu0 0.0
    %438 = vmatpush1.msra.mxu0 %v400
    %439 = vmatprep.subr.mxu0 0.0
    %440 = vmatpush1.msra.mxu0 %v401
    %441 = vmatprep.subr.mxu0 0.0
    %442 = vmatpush1.msra.mxu0 0.0
    %443 = vmatprep.subr.mxu0 0.0
    %444 = vmatpush1.msra.mxu0 0.0
    %445 = vmatprep.subr.mxu0 0.0
    %446 = vmatpush1.msra.mxu0 0.0
    %447 = vmatprep.subr.mxu0 0.0
    %448 = vmatpush1.msra.mxu0 0.0
    %449 = vmatprep.subr.mxu0 0.0
    %450 = vmatpush1.msra.mxu0 0.0
    %451 = vmatprep.subr.mxu0 0.0
    %452 = vmatpush1.msra.mxu0 0.0
    %453 = vmatprep.subr.mxu0 0.0
    %454 = vmatpush1.msra.mxu0 0.0
    %455 = vmatprep.subr.mxu0 0.0
    %456 = vmatpush1.msra.mxu0 0.0
    %457 = vmatprep.subr.mxu0 0.0
    %458 = vmatpush1.msra.mxu0 0.0
    %459 = vmatprep.subr.mxu0 0.0
    %460 = vmatpush1.msra.mxu0 0.0
    %461 = vmatprep.subr.mxu0 0.0
    %462 = vmatpush1.msra.mxu0 0.0
    %463 = vmatprep.subr.mxu0 0.0
    %464 = vmatpush1.msra.mxu0 0.0
    %465 = vmatprep.subr.mxu0 0.0
    %466 = vmatpush1.msra.mxu0 0.0
    %467 = vmatprep.subr.mxu0 0.0
    %468 = vmatpush1.msra.mxu0 0.0
    %469 = vmatprep.subr.mxu0 0.0
    %470 = vmatpush1.msra.mxu0 0.0
    %471 = vmatprep.subr.mxu0 0.0
    %472 = vmatpush1.msra.mxu0 0.0
    %473 = vmatprep.mubr.f32.mxu0 0.0
    %474 = vmatmul.mubr.f32.gmra.mrb[0].mxu0 %v385
    %v475 = vpop.f32.mrb[0].mxu0
    %v476 = vadd.f32 %v407, %v475
    %v477 = vpop.f32.mrb[0].mxu0
    %478 = vdwg.mxu0
    %v479 = vmax.f32 %v476, 0.0
    %v480 = vld [vmem:[#allocation13] sm:$0xff]
    %v481 = vld [vmem:[#allocation13 + $0x8] sm:$0xff]
    %v482 = vld [vmem:[#allocation13 + $0x10] sm:$0xff]
    %v483 = vld [vmem:[#allocation13 + $0x18] sm:$0xff]
    %v484 = vld [vmem:[#allocation13 + $0x20] sm:$0xff]
    %v485 = vld [vmem:[#allocation13 + $0x28] sm:$0xff]
    %v486 = vld [vmem:[#allocation13 + $0x30] sm:$0xff]
    %v487 = vld [vmem:[#allocation13 + $0x38] sm:$0xff]
    %v488 = vld [vmem:[#allocation13 + $0x40] sm:$0xff]
    %v489 = vld [vmem:[#allocation13 + $0x48] sm:$0xff]
    %v490 = vld [vmem:[#allocation13 + $0x50] sm:$0xff]
    %v491 = vld [vmem:[#allocation13 + $0x58] sm:$0xff]
    %v492 = vld [vmem:[#allocation13 + $0x60] sm:$0xff]
    %v493 = vld [vmem:[#allocation13 + $0x68] sm:$0xff]
    %v494 = vld [vmem:[#allocation13 + $0x70] sm:$0xff]
    %v495 = vld [vmem:[#allocation13 + $0x78] sm:$0xff]
    %v496 = vld [vmem:[%s10] sm:$0x1]
    %v498 = vlaneseq
    %v499 = vshrl.u32 %v498, 7
    %v500 = vsub.s32 0, %v499
    %v501 = vrot.slane %v496, %v500
    %503 = vmatprep.subr.mxu0 0.0
    %504 = vmatpush1.msra.mxu0 %v480
    %505 = vmatprep.subr.mxu0 0.0
    %506 = vmatpush1.msra.mxu0 %v481
    %507 = vmatprep.subr.mxu0 0.0
    %508 = vmatpush1.msra.mxu0 %v482
    %509 = vmatprep.subr.mxu0 0.0
    %510 = vmatpush1.msra.mxu0 %v483
    %511 = vmatprep.subr.mxu0 0.0
    %512 = vmatpush1.msra.mxu0 %v484
    %513 = vmatprep.subr.mxu0 0.0
    %514 = vmatpush1.msra.mxu0 %v485
    %515 = vmatprep.subr.mxu0 0.0
    %516 = vmatpush1.msra.mxu0 %v486
    %517 = vmatprep.subr.mxu0 0.0
    %518 = vmatpush1.msra.mxu0 %v487
    %519 = vmatprep.subr.mxu0 0.0
    %520 = vmatpush1.msra.mxu0 %v488
    %521 = vmatprep.subr.mxu0 0.0
    %522 = vmatpush1.msra.mxu0 %v489
    %523 = vmatprep.subr.mxu0 0.0
    %524 = vmatpush1.msra.mxu0 %v490
    %525 = vmatprep.subr.mxu0 0.0
    %526 = vmatpush1.msra.mxu0 %v491
    %527 = vmatprep.subr.mxu0 0.0
    %528 = vmatpush1.msra.mxu0 %v492
    %529 = vmatprep.subr.mxu0 0.0
    %530 = vmatpush1.msra.mxu0 %v493
    %531 = vmatprep.subr.mxu0 0.0
    %532 = vmatpush1.msra.mxu0 %v494
    %533 = vmatprep.subr.mxu0 0.0
    %534 = vmatpush1.msra.mxu0 %v495
    %535 = vmatprep.subr.mxu0 0.0
    %536 = vmatpush1.msra.mxu0 0.0
    %537 = vmatprep.subr.mxu0 0.0
    %538 = vmatpush1.msra.mxu0 0.0
    %539 = vmatprep.subr.mxu0 0.0
    %540 = vmatpush1.msra.mxu0 0.0
    %541 = vmatprep.subr.mxu0 0.0
    %542 = vmatpush1.msra.mxu0 0.0
    %543 = vmatprep.subr.mxu0 0.0
    %544 = vmatpush1.msra.mxu0 0.0
    %545 = vmatprep.subr.mxu0 0.0
    %546 = vmatpush1.msra.mxu0 0.0
    %547 = vmatprep.subr.mxu0 0.0
    %548 = vmatpush1.msra.mxu0 0.0
    %549 = vmatprep.subr.mxu0 0.0
    %550 = vmatpush1.msra.mxu0 0.0
    %551 = vmatprep.subr.mxu0 0.0
    %552 = vmatpush1.msra.mxu0 0.0
    %553 = vmatprep.subr.mxu0 0.0
    %554 = vmatpush1.msra.mxu0 0.0
    %555 = vmatprep.subr.mxu0 0.0
    %556 = vmatpush1.msra.mxu0 0.0
    %557 = vmatprep.subr.mxu0 0.0
    %558 = vmatpush1.msra.mxu0 0.0
    %559 = vmatprep.subr.mxu0 0.0
    %560 = vmatpush1.msra.mxu0 0.0
    %561 = vmatprep.subr.mxu0 0.0
    %562 = vmatpush1.msra.mxu0 0.0
    %563 = vmatprep.subr.mxu0 0.0
    %564 = vmatpush1.msra.mxu0 0.0
    %565 = vmatprep.subr.mxu0 0.0
    %566 = vmatpush1.msra.mxu0 0.0
    %567 = vmatprep.mubr.f32.mxu0 0.0
    %568 = vmatmul.mubr.f32.gmra.mrb[0].mxu0 %v479
    %v569 = vpop.f32.mrb[0].mxu0
    %v570 = vadd.f32 %v501, %v569
    %v571 = vpop.f32.mrb[0].mxu0
    %572 = vdwg.mxu0
    %573 = vst [vmem:[#allocation14] sm:$0xff] %v570
    // Predicated region
    $region74: #{tpu_custom_call.1} parent=1 // pred_check
      _
    $region75: #{tpu_custom_call.1} parent=1 // pred_check_branch
      %575 = sbr.rel (0) target = $region77
    $region76: #{tpu_custom_call.1} parent=1 // pred_region
      %s577 = ssub.s32 128, 128
      %578 = vsyncadd [#allocation4], %s577
      %s580 = sshll.u32 [#allocation14], 4
      %s581 = int_to_ptr.vmem [resolvable:$true] %s580
      %583 = dma.vmem_to_hbm [thread:$0]  %s581, 128, %s11, [#allocation4]
    $region77: #{tpu_custom_call.1} parent=1 // pred_fallthru
      _
    // Predicated region
    $region78: #{tpu_custom_call.1} parent=1 // pred_check
      _
    $region79: #{tpu_custom_call.1} parent=1 // pred_check_branch
      %585 = sbr.rel (0) target = $region81
    $region80: #{tpu_custom_call.1} parent=1 // pred_region
      %586 = dma.done [#allocation4], 128
    $region81: #{tpu_custom_call.1} parent=1 // pred_fallthru
      _
    %587 = vsyncpa [#allocation3], 1
    %588 = vsyncpa [#allocation6], 1
    %589 = vsyncpa [#allocation9], 1
    %590 = vsyncpa [#allocation12], 1
    %591 = vsyncpa [#allocation4], 1

</llo_original>
